<compile_context>
chip_gen: v7x
topology: tpu7x:2x2x1
jax: 0.10.0
libtpu: 0.0.40
codegen_flags: <defaults>
</compile_context>

<pallas_src>
import jax
import jax.numpy as jnp
from jax.experimental import pallas as pl
from jax.experimental.pallas import tpu as pltpu


def mlp_t_kernel(xT_ref, w1_ref, b1_ref, w2_ref, b2_ref, oT_ref):
    # h_T = relu(W1 @ x_T + b1)  ->  (H, tile_n), lane-dense over batch
    h = jnp.dot(w1_ref[...], xT_ref[...], preferred_element_type=jnp.float32)
    h = jnp.maximum(h + b1_ref[...], 0.0)
    # y_T = W2 @ h_T + b2        ->  (O, tile_n)
    y = jnp.dot(w2_ref[...], h, preferred_element_type=jnp.float32)
    oT_ref[...] = (y + b2_ref[...]).astype(oT_ref.dtype)


def net_forward(x, w1, b1, w2, b2, *, max_tile_n=1024):
    """x: (N, F); w1: (H, F); b1: (H,); w2: (O, H); b2: (O,)  (PyTorch layout).

    Returns (N, O), matching Net.forward(x).
    """
    N, F = x.shape
    H = w1.shape[0]
    O = w2.shape[0]

    # Batch along lanes; weights stay in native (out, in) layout; biases as columns.
    xT = x.T                      # (F, N)
    b1c = b1.reshape(H, 1)
    b2c = b2.reshape(O, 1)

    if N <= max_tile_n:
        tile_n = N                # single grid step: no pipeline prologue/epilogue
        n_pad = N
    else:
        tile_n = max_tile_n       # multiple of 128 -> lane-aligned tiles
        n_pad = pl.cdiv(N, tile_n) * tile_n
        if n_pad != N:
            xT = jnp.pad(xT, ((0, 0), (0, n_pad - N)))

    grid = (n_pad // tile_n,)

    cost = pl.CostEstimate(
        flops=2 * N * (F * H + H * O),
        transcendentals=0,
        bytes_accessed=4 * (N * F + H * F + H + O * H + O + N * O),
    )

    yT = pl.pallas_call(
        mlp_t_kernel,
        out_shape=jax.ShapeDtypeStruct((O, n_pad), x.dtype),
        grid_spec=pltpu.PrefetchScalarGridSpec(
            num_scalar_prefetch=0,
            grid=grid,
            in_specs=[
                pl.BlockSpec((F, tile_n), lambda i: (0, i)),   # x^T tile (lane-dense)
                pl.BlockSpec((H, F),      lambda i: (0, 0)),   # W1, resident across grid
                pl.BlockSpec((H, 1),      lambda i: (0, 0)),   # b1
                pl.BlockSpec((O, H),      lambda i: (0, 0)),   # W2, resident across grid
                pl.BlockSpec((O, 1),      lambda i: (0, 0)),   # b2
            ],
            out_specs=pl.BlockSpec((O, tile_n), lambda i: (0, i)),
        ),
        compiler_params=pltpu.CompilerParams(
            dimension_semantics=("parallel",)),
        cost_estimate=cost,
    )(xT, w1, b1c, w2, b2c)

    return yT[:, :N].T


def net_forward_ref(x, w1, b1, w2, b2):
    h = jnp.maximum(x @ w1.T + b1, 0.0)
    return h @ w2.T + b2


if __name__ == "__main__":
    # Small shapes implied by Net(n_feature, n_hidden, n_output).
    N, F, H, O = 128, 8, 32, 4

    key = jax.random.PRNGKey(0)
    kx, kw1, kb1, kw2, kb2 = jax.random.split(key, 5)

    x = jax.random.normal(kx, (N, F), dtype=jnp.float32)

    # PyTorch Linear default init: U(-1/sqrt(fan_in), 1/sqrt(fan_in)).
    bound1 = 1.0 / jnp.sqrt(jnp.float32(F))
    w1 = jax.random.uniform(kw1, (H, F), jnp.float32, -bound1, bound1)
    b1 = jax.random.uniform(kb1, (H,),   jnp.float32, -bound1, bound1)
    bound2 = 1.0 / jnp.sqrt(jnp.float32(H))
    w2 = jax.random.uniform(kw2, (O, H), jnp.float32, -bound2, bound2)
    b2 = jax.random.uniform(kb2, (O,),   jnp.float32, -bound2, bound2)

    out = net_forward(x, w1, b1, w2, b2)
    out = jax.block_until_ready(out)

    ref = net_forward_ref(x, w1, b1, w2, b2)
    assert out.shape == (N, O)
    assert jnp.allclose(out, ref, atol=1e-5, rtol=1e-5), "mismatch vs reference"

    print("KERNEL_OK")
</pallas_src>

<mosaic_0001>
module attributes {stable_mosaic.version = 11 : i64} {
  func.func @mlp_t_kernel(%arg0: i32, %arg1: memref<8x128xf32, #tpu.memory_space<vmem>>, %arg2: memref<32x8xf32, #tpu.memory_space<vmem>>, %arg3: memref<32x1xf32, #tpu.memory_space<vmem>>, %arg4: memref<4x32xf32, #tpu.memory_space<vmem>>, %arg5: memref<4x1xf32, #tpu.memory_space<vmem>>, %arg6: memref<4x128xf32, #tpu.memory_space<vmem>>) attributes {dimension_semantics = [#tpu.dimension_semantics<parallel>], iteration_bounds = array<i64: 1>, scalar_prefetch = 0 : i64, scratch_operands = 0 : i64, tpu.core_type = #tpu.core_type<tc>, window_params = [{transform_indices = @transform_0, window_bounds = array<i64: 8, 128>}, {pipeline_mode = #tpu.pipeline_mode<synchronous>, transform_indices = @transform_1, window_bounds = array<i64: 32, 8>}, {pipeline_mode = #tpu.pipeline_mode<synchronous>, transform_indices = @transform_2, window_bounds = array<i64: 32, 1>}, {pipeline_mode = #tpu.pipeline_mode<synchronous>, transform_indices = @transform_3, window_bounds = array<i64: 4, 32>}, {pipeline_mode = #tpu.pipeline_mode<synchronous>, transform_indices = @transform_4, window_bounds = array<i64: 4, 1>}, {transform_indices = @transform_5, window_bounds = array<i64: 4, 128>}]} {
    %c0 = arith.constant 0 : index
    %c0_0 = arith.constant 0 : index
    %0 = vector.load %arg2[%c0, %c0_0] : memref<32x8xf32, #tpu.memory_space<vmem>>, vector<32x8xf32>
    %c0_1 = arith.constant 0 : index
    %c0_2 = arith.constant 0 : index
    %1 = vector.load %arg1[%c0_1, %c0_2] : memref<8x128xf32, #tpu.memory_space<vmem>>, vector<8x128xf32>
    %cst = arith.constant dense<0.000000e+00> : vector<32x128xf32>
    %2 = tpu.matmul %0, %1, %cst {dimension_numbers = #tpu.dot_dimension_numbers<[1], [0], [0], [1], [0, 0, 1, 1], [], []>} : vector<32x8xf32>, vector<8x128xf32>, vector<32x128xf32> -> vector<32x128xf32>
    %c0_3 = arith.constant 0 : index
    %c0_4 = arith.constant 0 : index
    %3 = vector.load %arg3[%c0_3, %c0_4] : memref<32x1xf32, #tpu.memory_space<vmem>>, vector<32x1xf32>
    %4 = vector.broadcast %3 : vector<32x1xf32> to vector<32x128xf32>
    %5 = arith.addf %2, %4 : vector<32x128xf32>
    %cst_5 = arith.constant 0.000000e+00 : f32
    %6 = vector.broadcast %cst_5 : f32 to vector<32x128xf32>
    %7 = arith.maximumf %5, %6 : vector<32x128xf32>
    %c0_6 = arith.constant 0 : index
    %c0_7 = arith.constant 0 : index
    %8 = vector.load %arg4[%c0_6, %c0_7] : memref<4x32xf32, #tpu.memory_space<vmem>>, vector<4x32xf32>
    %cst_8 = arith.constant dense<0.000000e+00> : vector<4x128xf32>
    %9 = tpu.matmul %8, %7, %cst_8 {dimension_numbers = #tpu.dot_dimension_numbers<[1], [0], [0], [1], [0, 0, 1, 1], [], []>} : vector<4x32xf32>, vector<32x128xf32>, vector<4x128xf32> -> vector<4x128xf32>
    %c0_9 = arith.constant 0 : index
    %c0_10 = arith.constant 0 : index
    %10 = vector.load %arg5[%c0_9, %c0_10] : memref<4x1xf32, #tpu.memory_space<vmem>>, vector<4x1xf32>
    %11 = vector.broadcast %10 : vector<4x1xf32> to vector<4x128xf32>
    %12 = arith.addf %9, %11 : vector<4x128xf32>
    %c0_11 = arith.constant 0 : index
    %c0_12 = arith.constant 0 : index
    %13 = vector.load %arg6[%c0_11, %c0_12] : memref<4x128xf32, #tpu.memory_space<vmem>>, vector<4x128xf32>
    tpu.vector_store %arg6[%c0_11, %c0_12], %12 {strides = array<i32>} : memref<4x128xf32, #tpu.memory_space<vmem>>, vector<4x128xf32>,
    return
  }
  func.func @transform_0(%arg0: i32) -> (i32, i32) {
    %c0_i32 = arith.constant 0 : i32
    %c0_i32_0 = arith.constant 0 : i32
    return %c0_i32, %arg0 : i32, i32
  }
  func.func @transform_1(%arg0: i32) -> (i32, i32) {
    %c0_i32 = arith.constant 0 : i32
    %c0_i32_0 = arith.constant 0 : i32
    %c0_i32_1 = arith.constant 0 : i32
    return %c0_i32, %c0_i32_0 : i32, i32
  }
  func.func @transform_2(%arg0: i32) -> (i32, i32) {
    %c0_i32 = arith.constant 0 : i32
    %c0_i32_0 = arith.constant 0 : i32
    %c0_i32_1 = arith.constant 0 : i32
    return %c0_i32, %c0_i32_0 : i32, i32
  }
  func.func @transform_3(%arg0: i32) -> (i32, i32) {
    %c0_i32 = arith.constant 0 : i32
    %c0_i32_0 = arith.constant 0 : i32
    %c0_i32_1 = arith.constant 0 : i32
    return %c0_i32, %c0_i32_0 : i32, i32
  }
  func.func @transform_4(%arg0: i32) -> (i32, i32) {
    %c0_i32 = arith.constant 0 : i32
    %c0_i32_0 = arith.constant 0 : i32
    %c0_i32_1 = arith.constant 0 : i32
    return %c0_i32, %c0_i32_0 : i32, i32
  }
  func.func @transform_5(%arg0: i32) -> (i32, i32) {
    %c0_i32 = arith.constant 0 : i32
    %c0_i32_0 = arith.constant 0 : i32
    return %c0_i32, %arg0 : i32, i32
  }
}

</mosaic_0001>

<llo_original>
// kernel: tpu_custom_call.1
$region0: #{tpu_custom_call.1}
  #allocation0 [shape = 'u32[]', space=smem, size = 0x4, offset = 0x4, fixed_abs, tag = 'smem constant byte address 0x4 - core index']
  #allocation1 [shape = 'u32[144,128]{1,0:T(1,128)}', space=vmem, size = 0x12000, scoped, tag = 'internal scratch']
  %s0 = inlined_call_operand.vmem [shape: f32[8,128], index: 0, kind: input, shape index: {}]
  %s1 = inlined_call_operand.vmem [shape: f32[32,8], index: 1, kind: input, shape index: {}]
  %s2 = inlined_call_operand.vmem [shape: f32[32,1], index: 2, kind: input, shape index: {}]
  %s3 = inlined_call_operand.vmem [shape: f32[4,32], index: 3, kind: input, shape index: {}]
  %s4 = inlined_call_operand.vmem [shape: f32[4,1], index: 4, kind: input, shape index: {}]
  %s5 = inlined_call_operand.hbm [shape: f32[4,128], index: 5, kind: output, shape index: {}]
  %s6 = sld [smem:[#allocation0]]
  $region30: #{tpu_custom_call.1} parent=0
    _
  %s8 = ssub.s32 1, %s6
  %s9 = scalar_select 0, %s8, %s6
  $region1: #{tpu_custom_call.1} parent=0
    #allocation2 [shape = 'u8[2048]{0}', space=vmem, size = 0x800, scoped, tag = 'output window, operand 0, single buffered']
    #allocation3 [shape = 's32[1]{0}', space=sflag, size = 0x4, scoped, tag = 'scoped memory for tpu_custom_call.1']
    %10 = vsyncpa [#allocation3], 0
    // Predicated region
    $region2: #{tpu_custom_call.1} parent=1 // pred_check
      _
    $region3: #{tpu_custom_call.1} parent=1 // pred_check_branch
      %12 = sbr.rel (0) target = $region5
    $region4: #{tpu_custom_call.1} parent=1 // pred_region
      _
    $region5: #{tpu_custom_call.1} parent=1 // pred_fallthru
      _
    // Predicated region
    $region6: #{tpu_custom_call.1} parent=1 // pred_check
      _
    $region7: #{tpu_custom_call.1} parent=1 // pred_check_branch
      %14 = sbr.rel (0) target = $region9
    $region8: #{tpu_custom_call.1} parent=1 // pred_region
      _
    $region9: #{tpu_custom_call.1} parent=1 // pred_fallthru
      _
    // Predicated region
    $region10: #{tpu_custom_call.1} parent=1 // pred_check
      _
    $region11: #{tpu_custom_call.1} parent=1 // pred_check_branch
      %16 = sbr.rel (0) target = $region13
    $region12: #{tpu_custom_call.1} parent=1 // pred_region
      _
    $region13: #{tpu_custom_call.1} parent=1 // pred_fallthru
      _
    // Predicated region
    $region14: #{tpu_custom_call.1} parent=1 // pred_check
      _
    $region15: #{tpu_custom_call.1} parent=1 // pred_check_branch
      %18 = sbr.rel (0) target = $region17
    $region16: #{tpu_custom_call.1} parent=1 // pred_region
      _
    $region17: #{tpu_custom_call.1} parent=1 // pred_fallthru
      _
    // Predicated region
    $region18: #{tpu_custom_call.1} parent=1 // pred_check
      _
    $region19: #{tpu_custom_call.1} parent=1 // pred_check_branch
      %20 = sbr.rel (0) target = $region21
    $region20: #{tpu_custom_call.1} parent=1 // pred_region
      _
    $region21: #{tpu_custom_call.1} parent=1 // pred_fallthru
      _
    %v21 = vld [vmem:[%s1] sm:$0xff]
    %v22 = vld [vmem:[%s1 + $0x8] sm:$0xff]
    %v23 = vld [vmem:[%s1 + $0x10] sm:$0xff]
    %v24 = vld [vmem:[%s1 + $0x18] sm:$0xff]
    %v25 = vld [vmem:[%s0] sm:$0xff]
    %v26 = vld [vmem:[%s2] sm:$0xff]
    %v27 = vld [vmem:[%s2 + $0x8] sm:$0xff]
    %v28 = vld [vmem:[%s2 + $0x10] sm:$0xff]
    %v29 = vld [vmem:[%s2 + $0x18] sm:$0xff]
    %31 = vset.pattern.permute.xlu0 0
    %32 = vperm.xlu0 %31, %v26
    %v33 = vpop.permute.xlu0 %32
    %36 = vset.pattern.permute.xlu0 0
    %37 = vperm.xlu0 %36, %v27
    %v38 = vpop.permute.xlu0 %37
    %41 = vset.pattern.permute.xlu0 0
    %42 = vperm.xlu0 %41, %v28
    %v43 = vpop.permute.xlu0 %42
    %46 = vset.pattern.permute.xlu0 0
    %47 = vperm.xlu0 %46, %v29
    %v48 = vpop.permute.xlu0 %47
    %vm50 = vcmask 64512
    %v52 = vsel %vm50, %v21, 0
    %v55 = vsel %vm50, %v22, 0
    %v58 = vsel %vm50, %v23, 0
    %v61 = vsel %vm50, %v24, 0
    %63 = vmatprep.subr.mxu0 0.0
    %64 = vmatpush1.msra.mxu0 %v25
    %65 = vmatprep.subr.mxu0 0.0
    %66 = vmatpush1.msra.mxu0 0.0
    %67 = vmatprep.subr.mxu0 0.0
    %68 = vmatpush1.msra.mxu0 0.0
    %69 = vmatprep.subr.mxu0 0.0
    %70 = vmatpush1.msra.mxu0 0.0
    %71 = vmatprep.subr.mxu0 0.0
    %72 = vmatpush1.msra.mxu0 0.0
    %73 = vmatprep.subr.mxu0 0.0
    %74 = vmatpush1.msra.mxu0 0.0
    %75 = vmatprep.subr.mxu0 0.0
    %76 = vmatpush1.msra.mxu0 0.0
    %77 = vmatprep.subr.mxu0 0.0
    %78 = vmatpush1.msra.mxu0 0.0
    %79 = vmatprep.subr.mxu0 0.0
    %80 = vmatpush1.msra.mxu0 0.0
    %81 = vmatprep.subr.mxu0 0.0
    %82 = vmatpush1.msra.mxu0 0.0
    %83 = vmatprep.subr.mxu0 0.0
    %84 = vmatpush1.msra.mxu0 0.0
    %85 = vmatprep.subr.mxu0 0.0
    %86 = vmatpush1.msra.mxu0 0.0
    %87 = vmatprep.subr.mxu0 0.0
    %88 = vmatpush1.msra.mxu0 0.0
    %89 = vmatprep.subr.mxu0 0.0
    %90 = vmatpush1.msra.mxu0 0.0
    %91 = vmatprep.subr.mxu0 0.0
    %92 = vmatpush1.msra.mxu0 0.0
    %93 = vmatprep.subr.mxu0 0.0
    %94 = vmatpush1.msra.mxu0 0.0
    %95 = vmatprep.subr.mxu0 0.0
    %96 = vmatpush1.msra.mxu0 0.0
    %97 = vmatprep.subr.mxu0 0.0
    %98 = vmatpush1.msra.mxu0 0.0
    %99 = vmatprep.subr.mxu0 0.0
    %100 = vmatpush1.msra.mxu0 0.0
    %101 = vmatprep.subr.mxu0 0.0
    %102 = vmatpush1.msra.mxu0 0.0
    %103 = vmatprep.subr.mxu0 0.0
    %104 = vmatpush1.msra.mxu0 0.0
    %105 = vmatprep.subr.mxu0 0.0
    %106 = vmatpush1.msra.mxu0 0.0
    %107 = vmatprep.subr.mxu0 0.0
    %108 = vmatpush1.msra.mxu0 0.0
    %109 = vmatprep.subr.mxu0 0.0
    %110 = vmatpush1.msra.mxu0 0.0
    %111 = vmatprep.subr.mxu0 0.0
    %112 = vmatpush1.msra.mxu0 0.0
    %113 = vmatprep.subr.mxu0 0.0
    %114 = vmatpush1.msra.mxu0 0.0
    %115 = vmatprep.subr.mxu0 0.0
    %116 = vmatpush1.msra.mxu0 0.0
    %117 = vmatprep.subr.mxu0 0.0
    %118 = vmatpush1.msra.mxu0 0.0
    %119 = vmatprep.subr.mxu0 0.0
    %120 = vmatpush1.msra.mxu0 0.0
    %121 = vmatprep.subr.mxu0 0.0
    %122 = vmatpush1.msra.mxu0 0.0
    %123 = vmatprep.subr.mxu0 0.0
    %124 = vmatpush1.msra.mxu0 0.0
    %125 = vmatprep.subr.mxu0 0.0
    %126 = vmatpush1.msra.mxu0 0.0
    %127 = vmatprep.mubr.f32.mxu0 0.0
    %128 = vmatmul.mubr.f32.gmra.mrb[0].mxu0 %v52
    %v129 = vpop.f32.mrb[0].mxu0
    %v130 = vadd.f32 %v33, %v129
    %v131 = vpop.f32.mrb[0].mxu0
    %132 = vmatprep.mubr.f32.mxu0 0.0
    %133 = vmatmul.mubr.f32.gmra.mrb[0].mxu0 %v55
    %v134 = vpop.f32.mrb[0].mxu0
    %v135 = vadd.f32 %v38, %v134
    %v136 = vpop.f32.mrb[0].mxu0
    %137 = vmatprep.mubr.f32.mxu0 0.0
    %138 = vmatmul.mubr.f32.gmra.mrb[0].mxu0 %v58
    %v139 = vpop.f32.mrb[0].mxu0
    %v140 = vadd.f32 %v43, %v139
    %v141 = vpop.f32.mrb[0].mxu0
    %142 = vmatprep.mubr.f32.mxu0 0.0
    %143 = vmatmul.mubr.f32.gmra.mrb[0].mxu0 %v61
    %v144 = vpop.f32.mrb[0].mxu0
    %v145 = vadd.f32 %v48, %v144
    %v146 = vpop.f32.mrb[0].mxu0
    %147 = vdwg.mxu0
    %v148 = vmax.f32 %v130, 0.0
    %v149 = vmax.f32 %v135, 0.0
    %v150 = vmax.f32 %v140, 0.0
    %v151 = vmax.f32 %v145, 0.0
    %v152 = vld [vmem:[%s3] sm:$0xf]
    %v153 = vld [vmem:[%s4] sm:$0xf]
    %155 = vset.pattern.permute.xlu0 0
    %156 = vperm.xlu0 %155, %v153
    %v157 = vpop.permute.xlu0 %156
    %vm159 = vcmask 261120
    %v161 = vsel %vm159, %v152, 0
    %163 = vmatprep.subr.mxu0 0.0
    %164 = vmatpush1.msra.mxu0 %v148
    %165 = vmatprep.subr.mxu0 0.0
    %166 = vmatpush1.msra.mxu0 %v149
    %167 = vmatprep.subr.mxu0 0.0
    %168 = vmatpush1.msra.mxu0 %v150
    %169 = vmatprep.subr.mxu0 0.0
    %170 = vmatpush1.msra.mxu0 %v151
    %171 = vmatprep.subr.mxu0 0.0
    %172 = vmatpush1.msra.mxu0 0.0
    %173 = vmatprep.subr.mxu0 0.0
    %174 = vmatpush1.msra.mxu0 0.0
    %175 = vmatprep.subr.mxu0 0.0
    %176 = vmatpush1.msra.mxu0 0.0
    %177 = vmatprep.subr.mxu0 0.0
    %178 = vmatpush1.msra.mxu0 0.0
    %179 = vmatprep.subr.mxu0 0.0
    %180 = vmatpush1.msra.mxu0 0.0
    %181 = vmatprep.subr.mxu0 0.0
    %182 = vmatpush1.msra.mxu0 0.0
    %183 = vmatprep.subr.mxu0 0.0
    %184 = vmatpush1.msra.mxu0 0.0
    %185 = vmatprep.subr.mxu0 0.0
    %186 = vmatpush1.msra.mxu0 0.0
    %187 = vmatprep.subr.mxu0 0.0
    %188 = vmatpush1.msra.mxu0 0.0
    %189 = vmatprep.subr.mxu0 0.0
    %190 = vmatpush1.msra.mxu0 0.0
    %191 = vmatprep.subr.mxu0 0.0
    %192 = vmatpush1.msra.mxu0 0.0
    %193 = vmatprep.subr.mxu0 0.0
    %194 = vmatpush1.msra.mxu0 0.0
    %195 = vmatprep.subr.mxu0 0.0
    %196 = vmatpush1.msra.mxu0 0.0
    %197 = vmatprep.subr.mxu0 0.0
    %198 = vmatpush1.msra.mxu0 0.0
    %199 = vmatprep.subr.mxu0 0.0
    %200 = vmatpush1.msra.mxu0 0.0
    %201 = vmatprep.subr.mxu0 0.0
    %202 = vmatpush1.msra.mxu0 0.0
    %203 = vmatprep.subr.mxu0 0.0
    %204 = vmatpush1.msra.mxu0 0.0
    %205 = vmatprep.subr.mxu0 0.0
    %206 = vmatpush1.msra.mxu0 0.0
    %207 = vmatprep.subr.mxu0 0.0
    %208 = vmatpush1.msra.mxu0 0.0
    %209 = vmatprep.subr.mxu0 0.0
    %210 = vmatpush1.msra.mxu0 0.0
    %211 = vmatprep.subr.mxu0 0.0
    %212 = vmatpush1.msra.mxu0 0.0
    %213 = vmatprep.subr.mxu0 0.0
    %214 = vmatpush1.msra.mxu0 0.0
    %215 = vmatprep.subr.mxu0 0.0
    %216 = vmatpush1.msra.mxu0 0.0
    %217 = vmatprep.subr.mxu0 0.0
    %218 = vmatpush1.msra.mxu0 0.0
    %219 = vmatprep.subr.mxu0 0.0
    %220 = vmatpush1.msra.mxu0 0.0
    %221 = vmatprep.subr.mxu0 0.0
    %222 = vmatpush1.msra.mxu0 0.0
    %223 = vmatprep.subr.mxu0 0.0
    %224 = vmatpush1.msra.mxu0 0.0
    %225 = vmatprep.subr.mxu0 0.0
    %226 = vmatpush1.msra.mxu0 0.0
    %227 = vmatprep.mubr.f32.mxu0 0.0
    %228 = vmatmul.mubr.f32.gmra.mrb[0].mxu0 %v161
    %v229 = vpop.f32.mrb[0].mxu0
    %v230 = vadd.f32 %v157, %v229
    %v231 = vpop.f32.mrb[0].mxu0
    %232 = vdwg.mxu0
    %233 = vst [vmem:[#allocation2] sm:$0xf] %v230
    // Predicated region
    $region22: #{tpu_custom_call.1} parent=1 // pred_check
      _
    $region23: #{tpu_custom_call.1} parent=1 // pred_check_branch
      %235 = sbr.rel (0) target = $region25
    $region24: #{tpu_custom_call.1} parent=1 // pred_region
      %s237 = ssub.s32 64, 64
      %238 = vsyncadd [#allocation3], %s237
      %s240 = sshll.u32 [#allocation2], 4
      %s241 = int_to_ptr.vmem [resolvable:$true] %s240
      %243 = dma.vmem_to_hbm [thread:$0]  %s241, 64, %s5, [#allocation3]
    $region25: #{tpu_custom_call.1} parent=1 // pred_fallthru
      _
    // Predicated region
    $region26: #{tpu_custom_call.1} parent=1 // pred_check
      _
    $region27: #{tpu_custom_call.1} parent=1 // pred_check_branch
      %245 = sbr.rel (0) target = $region29
    $region28: #{tpu_custom_call.1} parent=1 // pred_region
      %246 = dma.done [#allocation3], 64
    $region29: #{tpu_custom_call.1} parent=1 // pred_fallthru
      _
    %247 = vsyncpa [#allocation3], 1

</llo_original>
